<compile_context>
chip_gen: v6e
topology: v6e:2x2x1
jax: 0.10.0
libtpu: 0.0.40
codegen_flags: <defaults>
</compile_context>

<pallas_src>
import jax
import jax.numpy as jnp
from jax.experimental import pallas as pl
from jax.experimental.pallas import tpu as pltpu


def _hbm_copy_kernel(x_hbm, o_hbm, sem):
    # Single bulk HBM -> HBM DMA of the whole buffer: one HBM read + one HBM
    # write, no VMEM staging, no grid bookkeeping.
    cp = pltpu.make_async_copy(x_hbm, o_hbm, sem)
    cp.start()
    cp.wait()


@jax.jit
def _pallas_materialized_copy(x: jax.Array) -> jax.Array:
    """Produce a distinct HBM buffer holding a copy of `x` via a Pallas DMA kernel."""
    if x.size == 0:  # static under jit; nothing to copy
        return x

    nbytes = x.size * jnp.dtype(x.dtype).itemsize
    cost = pl.CostEstimate(
        flops=0,
        transcendentals=0,
        bytes_accessed=2 * nbytes,  # one read + one write
    )

    return pl.pallas_call(
        _hbm_copy_kernel,
        out_shape=jax.ShapeDtypeStruct(x.shape, x.dtype),
        in_specs=[pl.BlockSpec(memory_space=pl.ANY)],   # raw HBM ref, no auto-DMA
        out_specs=pl.BlockSpec(memory_space=pl.ANY),    # raw HBM ref, we DMA into it
        scratch_shapes=[pltpu.SemaphoreType.DMA],
        cost_estimate=cost,
    )(x)


class OutputLogger:
    """JAX/Pallas port of torch.quantization.ns OutputLogger.

    forward(x): appends a detached snapshot of x to self.stats and returns x
    unchanged.

    By default the snapshot is `jax.lax.stop_gradient(x)` — the faithful
    equivalent of torch's `.detach()` (neither copies storage), with zero
    extra HBM traffic.  Pass `materialize=True` to record a physically
    distinct HBM buffer (copied by the Pallas HBM->HBM DMA kernel), e.g. when
    the original buffer may be donated/overwritten downstream.
    """

    def __init__(self, node_name: str, model_name: str, ref_name: str,
                 node_target_type: str, materialize: bool = False):
        self.stats = []
        self.node_name = node_name
        self.model_name = model_name
        self.ref_name = ref_name
        self.node_target_type = node_target_type
        self.materialize = materialize

    def __call__(self, x: jax.Array) -> jax.Array:
        # "detach" == stop_gradient; no copy, exactly like torch.detach().
        snapshot = jax.lax.stop_gradient(x)
        if self.materialize and snapshot.size > 0:
            # Explicitly requested duplicate buffer: single HBM->HBM DMA.
            snapshot = _pallas_materialized_copy(snapshot)
        self.stats.append(snapshot)
        return x

    def __repr__(self):
        return (f"OutputLogger(ref_name={self.ref_name}, "
                f"model_name={self.model_name}, node_name={self.node_name})")


if __name__ == "__main__":
    key = jax.random.PRNGKey(0)

    # NCHW activation, like a conv output being logged by the numeric suite.
    x = jax.random.normal(key, (2, 4, 16, 16), dtype=jnp.float32)

    # 1) Default (faithful, zero-copy) logger path.
    logger = OutputLogger(
        node_name="conv1",
        model_name="model_a",
        ref_name="conv1_ref",
        node_target_type="torch.nn.Conv2d",
    )
    y = logger(x)
    jax.block_until_ready(y)
    jax.block_until_ready(logger.stats[0])
    assert y.shape == x.shape and y.dtype == x.dtype
    assert len(logger.stats) == 1
    assert bool(jnp.array_equal(y, x))
    assert bool(jnp.array_equal(logger.stats[0], x))

    # 2) Materializing logger: exercises the Pallas HBM->HBM DMA copy kernel.
    logger_m = OutputLogger(
        node_name="conv1",
        model_name="model_a",
        ref_name="conv1_ref",
        node_target_type="torch.nn.Conv2d",
        materialize=True,
    )
    y_m = logger_m(x)
    jax.block_until_ready(y_m)
    jax.block_until_ready(logger_m.stats[0])
    assert y_m.shape == x.shape and y_m.dtype == x.dtype
    assert bool(jnp.array_equal(logger_m.stats[0], x))

    # 3) Direct kernel checks: the DMA path needs no pad/reshape, so odd,
    #    non-lane-aligned shapes and other dtypes go through unchanged.
    x_odd = jax.random.normal(key, (3, 5, 7, 11), dtype=jnp.float32)  # 1155 elems
    snap_odd = _pallas_materialized_copy(x_odd)
    jax.block_until_ready(snap_odd)
    assert snap_odd.shape == x_odd.shape and snap_odd.dtype == x_odd.dtype
    assert bool(jnp.array_equal(snap_odd, x_odd))

    x_bf16 = jax.random.normal(key, (8, 128), dtype=jnp.bfloat16)
    snap_bf16 = _pallas_materialized_copy(x_bf16)
    jax.block_until_ready(snap_bf16)
    assert snap_bf16.dtype == jnp.bfloat16
    assert bool(jnp.array_equal(snap_bf16, x_bf16))

    print("KERNEL_OK")
</pallas_src>

<mosaic_0001>
module attributes {stable_mosaic.version = 11 : i64} {
  func.func @_hbm_copy_kernel(%arg0: memref<2x4x16x16xf32, #tpu.memory_space<any>>, %arg1: memref<2x4x16x16xf32, #tpu.memory_space<any>>, %arg2: memref<!tpu.dma_semaphore, #tpu.memory_space<semaphore_mem>>) attributes {dimension_semantics = [], scalar_prefetch = 0 : i64, scratch_operands = 1 : i64, tpu.core_type = #tpu.core_type<tc>} {
    tpu.enqueue_dma source(%arg0 : memref<2x4x16x16xf32, #tpu.memory_space<any>>) target(%arg1 : memref<2x4x16x16xf32, #tpu.memory_space<any>>) target_semaphore(%arg2 : memref<!tpu.dma_semaphore, #tpu.memory_space<semaphore_mem>>)
    tpu.wait_dma2 semaphore(%arg2 : memref<!tpu.dma_semaphore, #tpu.memory_space<semaphore_mem>>) src(%arg0 : memref<2x4x16x16xf32, #tpu.memory_space<any>>) dst(%arg1 : memref<2x4x16x16xf32, #tpu.memory_space<any>>)
    return
  }
}

</mosaic_0001>

<llo_original>
// kernel: _pallas_materialized_copy.1
$region0: #{_pallas_materialized_copy.1}
  #allocation0 [shape = 'u32[]', space=smem, size = 0x4, offset = 0x4, fixed_abs, tag = 'smem constant byte address 0x4 - core index']
  #allocation1 [shape = 'u32[144,128]{1,0:T(1,128)}', space=vmem, size = 0x12000, scoped, tag = 'internal scratch']
  #allocation2 [shape = 's32[1]{0}', space=sflag, size = 0x4, scoped, tag = 'scratch operand']
  #allocation3 [shape = 's32[]', space=sflag, size = 0x4, offset = 0, fixed_abs, tag = 'sflag constant byte address 0x0 - dummy sync flag']
  #allocation4 [shape = 'u32[0]{0}', space=smem, size = 0, offset = 0, fixed_abs, tag = 'smem constant byte address 0x0 - null']
  %s0 = inlined_call_operand.hbm [shape: f32[2,4,16,16], index: 0, kind: input, shape index: {}]
  %s1 = inlined_call_operand.hbm [shape: f32[2,4,16,16], index: 1, kind: output, shape index: {}]
  %s2 = sld [smem:[#allocation0]]
  $region2: #{_pallas_materialized_copy.1} parent=0
    _
  %s4 = ssub.s32 1, %s2
  %s5 = scalar_select 0, %s4, %s2
  %s7 = sshll.u32 1, 14
  %s8 = sxor.u32 4294967295, %s7
  %12 = dma.general %s0, 2048, %s1, [#allocation2], 131072, [#allocation4], 0, 0
  %s13 = smul.u32 2, 4
  %s14 = smul.u32 %s13, 16
  %s15 = smul.u32 %s14, 1
  %s16 = sshll.u32 %s15, 4
  %17 = dma.done [#allocation2], %s16
  %18 = vsyncmov [#allocation2]
  %s19 = vpop.sfrf %18
  %p20 = scmp.eq.s32.totalorder %s19, 0
  %p21 = pneg %p20
  %23 = shalt.err (%p21)

</llo_original>
